<compile_context>
chip_gen: v6e
topology: v6e:2x2x1
jax: 0.10.0
libtpu: 0.0.40
codegen_flags: <defaults>
</compile_context>

<pallas_src>
import jax
import jax.numpy as jnp
from jax.experimental import pallas as pl
from jax.experimental.pallas import tpu as pltpu


def _round_up(x, m):
    return ((x + m - 1) // m) * m


def _cdiv(a, b):
    return (a + b - 1) // b


def rbf_kernel(x_ref, ct_ref, cbias_ref, w_ref, b_ref, o_ref):
    # x_ref:     (TILE_N, K_pad)  bf16   [x | ||x||^2 | 0-pad]      (batch tile)
    # ct_ref:    (K_pad, C_pad)   bf16   [(2*beta*c)^T ; -beta ; 0] (resident)
    # cbias_ref: (1, C_pad)       f32    -beta*||c||^2 (0 in pad)   (resident)
    # w_ref:     (C_pad, O_pad)   bf16   W^T, zero-padded           (resident)
    # b_ref:     (1, O_pad)       f32    bias, zero-padded          (resident)
    # o_ref:     (TILE_N, O_pad)  f32    lane-dense output tile
    xc = jnp.dot(x_ref[...], ct_ref[...],
                 preferred_element_type=jnp.float32)          # MXU (bf16 in, f32 acc)
    exponent = xc + cbias_ref[...]                            # VPU, f32
    phi = jnp.exp(exponent)                                   # EUP, f32
    phi_b = phi.astype(jnp.bfloat16)                          # bf16 for 2nd MXU pass
    o_ref[...] = (
        jnp.dot(phi_b, w_ref[...], preferred_element_type=jnp.float32)
        + b_ref[...]
    )


def prepare_rbf_params(centers, beta, weight, bias):
    """One-time (per weight set) constant preparation: fold beta, transpose, pad, cast."""
    f32, bf16 = jnp.float32, jnp.bfloat16
    centers = jnp.asarray(centers, f32)
    beta = jnp.asarray(beta, f32)
    weight = jnp.asarray(weight, f32)
    bias = jnp.asarray(bias, f32)

    C, D = centers.shape
    out_dim = weight.shape[0]

    C_pad = _round_up(C, 128)
    O_pad = _round_up(out_dim, 128)
    # Contraction dim = D features + 1 slot for ||x||^2; only lane-pad it when
    # D is already large (padding a tiny D would just inflate x HBM traffic).
    K = D + 1
    K_pad = _round_up(K, 128) if D >= 128 else K

    # -beta*||x - c||^2 = [x, ||x||^2] @ [(2*beta*c)^T ; -beta]  -  beta*||c||^2
    ct = jnp.zeros((K_pad, C_pad), f32)
    ct = ct.at[:D, :C].set((2.0 * beta[:, None] * centers).T)
    ct = ct.at[D, :C].set(-beta)

    cbias = jnp.zeros((1, C_pad), f32)
    cbias = cbias.at[0, :C].set(-beta * jnp.sum(centers * centers, axis=1))

    w_t = jnp.zeros((C_pad, O_pad), f32)
    w_t = w_t.at[:C, :out_dim].set(weight.T)

    b_row = jnp.zeros((1, O_pad), f32)
    b_row = b_row.at[0, :out_dim].set(bias)

    return dict(
        ct=ct.astype(bf16),        # zero padding stays exactly zero after cast
        cbias=cbias,
        w_t=w_t.astype(bf16),
        b_row=b_row,
        D=D, C=C, out_dim=out_dim, C_pad=C_pad, O_pad=O_pad, K_pad=K_pad,
    )


def rbf_forward_prepared(x, params, *, max_tile_n=1024, vmem_budget_bytes=40 << 20):
    """x: (N, D) float array, params: output of prepare_rbf_params."""
    f32, bf16 = jnp.float32, jnp.bfloat16
    x = jnp.asarray(x, f32)
    N, D = x.shape
    assert D == params["D"], "feature dim mismatch with centers"
    K_pad, C_pad, O_pad = params["K_pad"], params["C_pad"], params["O_pad"]

    # Augment x with ||x||^2 (f32) so the -beta*||x||^2 term rides the MXU.
    x_aug = jnp.zeros((N, K_pad), f32)
    x_aug = x_aug.at[:, :D].set(x)
    x_aug = x_aug.at[:, D].set(jnp.sum(x * x, axis=1))
    x_aug = x_aug.astype(bf16)

    # ---- tile / grid sizing -------------------------------------------------
    # >=2 grid steps whenever N > 8 (v7x shards the "parallel" axis across its
    # 2 TensorCores); last tile carries <8 padded rows (no near-2x padding).
    num_tiles = max(_cdiv(N, max_tile_n), 2 if N > 8 else 1)
    TILE_N = _round_up(_cdiv(N, num_tiles), 8)

    # Shrink TILE_N if double-buffered tiles + resident constants would exceed
    # a v7x-safe VMEM budget.
    resident_bytes = (K_pad * C_pad * 2 + C_pad * 4 + C_pad * O_pad * 2 + O_pad * 4)

    def step_bytes(t):  # double-buffered x tile (bf16) + output tile (f32)
        return 2 * t * K_pad * 2 + 2 * t * O_pad * 4

    while TILE_N > 8 and 2 * resident_bytes + step_bytes(TILE_N) > vmem_budget_bytes:
        TILE_N = max(8, _round_up(TILE_N // 2, 8))

    N_pad = _round_up(N, TILE_N)
    grid = (N_pad // TILE_N,)
    x_aug = jnp.pad(x_aug, ((0, N_pad - N), (0, 0)))

    # Resident constants: block index never changes, so double-buffering them
    # is pure VMEM waste once they get large -> request a single buffer.
    const_mode = {}
    if resident_bytes > (8 << 20):
        const_mode = dict(pipeline_mode=pl.Buffered(1))
    resident_buf_factor = 1 if const_mode else 2

    vmem_needed = resident_buf_factor * resident_bytes + step_bytes(TILE_N)
    vmem_limit_bytes = int(min(max(vmem_needed + (4 << 20), 16 << 20), 100 << 20))

    cost = pl.CostEstimate(
        flops=2 * N_pad * C_pad * (K_pad + O_pad),
        transcendentals=N_pad * C_pad,
        bytes_accessed=int(N_pad * K_pad * 2 + N_pad * O_pad * 4 + resident_bytes),
    )

    out_padded = pl.pallas_call(
        rbf_kernel,
        out_shape=jax.ShapeDtypeStruct((N_pad, O_pad), f32),
        grid_spec=pltpu.PrefetchScalarGridSpec(
            num_scalar_prefetch=0,
            grid=grid,
            in_specs=[
                pl.BlockSpec((TILE_N, K_pad), lambda i: (i, 0)),               # x_aug: tiled
                pl.BlockSpec((K_pad, C_pad), lambda i: (0, 0), **const_mode),  # ct
                pl.BlockSpec((1, C_pad), lambda i: (0, 0), **const_mode),      # -beta*||c||^2
                pl.BlockSpec((C_pad, O_pad), lambda i: (0, 0), **const_mode),  # W^T
                pl.BlockSpec((1, O_pad), lambda i: (0, 0), **const_mode),      # bias
            ],
            out_specs=pl.BlockSpec((TILE_N, O_pad), lambda i: (i, 0)),
        ),
        compiler_params=pltpu.CompilerParams(
            dimension_semantics=("parallel",),
            vmem_limit_bytes=vmem_limit_bytes,
        ),
        cost_estimate=cost,
    )(x_aug, params["ct"], params["cbias"], params["w_t"], params["b_row"])

    return out_padded[:N, :params["out_dim"]]


def rbf_forward(x, centers, beta, weight, bias, **kwargs):
    """Convenience wrapper (constant prep + kernel). Hoist prepare_rbf_params
    out of the hot loop when calling repeatedly with the same weights."""
    params = prepare_rbf_params(centers, beta, weight, bias)
    return rbf_forward_prepared(x, params, **kwargs)


def rbf_reference(x, centers, beta, weight, bias):
    diff = x[:, None, :] - centers[None, :, :]          # (N, C, D)
    dist2 = jnp.sum(diff * diff, axis=2)                # (N, C)
    phi = jnp.exp(-beta[None, :] * dist2)               # (N, C)
    return phi @ weight.T + bias[None, :]


if __name__ == "__main__":
    key = jax.random.PRNGKey(0)
    k_x, k_c, k_w, k_b = jax.random.split(key, 4)

    # Small shapes consistent with an RBFN over a low-dimensional ODE state.
    N, D = 64, 2          # 64 sample points in a 2-D state space
    C = 32                # number of RBF centers
    out_dim = 8

    x = jax.random.normal(k_x, (N, D), dtype=jnp.float32)
    centers = jax.random.normal(k_c, (C, D), dtype=jnp.float32)
    beta = jnp.ones((C,), dtype=jnp.float32)                     # nn.Parameter(torch.ones(C))
    # nn.Linear(C, out_dim)-style deterministic synthetic init
    lim = 1.0 / (C ** 0.5)
    weight = jax.random.uniform(k_w, (out_dim, C), minval=-lim, maxval=lim, dtype=jnp.float32)
    bias = jax.random.uniform(k_b, (out_dim,), minval=-lim, maxval=lim, dtype=jnp.float32)

    params = prepare_rbf_params(centers, beta, weight, bias)     # once per weight set
    out = rbf_forward_prepared(x, params)
    out = jax.block_until_ready(out)

    ref = rbf_reference(x, centers, beta, weight, bias)
    assert out.shape == (N, out_dim)
    # Tolerance reflects bf16 rounding of the matmul operands (f32 accumulation,
    # f32 exponent arithmetic).
    max_err = float(jnp.max(jnp.abs(out - ref)))
    assert max_err < 5e-2, f"mismatch vs reference: max abs err {max_err}"

    print("KERNEL_OK")
</pallas_src>

<mosaic_0001>
module attributes {stable_mosaic.version = 11 : i64} {
  func.func @rbf_kernel(%arg0: i32, %arg1: memref<32x3xbf16, #tpu.memory_space<vmem>>, %arg2: memref<3x128xbf16, #tpu.memory_space<vmem>>, %arg3: memref<1x128xf32, #tpu.memory_space<vmem>>, %arg4: memref<128x128xbf16, #tpu.memory_space<vmem>>, %arg5: memref<1x128xf32, #tpu.memory_space<vmem>>, %arg6: memref<32x128xf32, #tpu.memory_space<vmem>>) attributes {dimension_semantics = [#tpu.dimension_semantics<parallel>], iteration_bounds = array<i64: 2>, scalar_prefetch = 0 : i64, scratch_operands = 0 : i64, tpu.core_type = #tpu.core_type<tc>, window_params = [{transform_indices = @transform_0, window_bounds = array<i64: 32, 3>}, {pipeline_mode = #tpu.pipeline_mode<synchronous>, transform_indices = @transform_1, window_bounds = array<i64: 3, 128>}, {pipeline_mode = #tpu.pipeline_mode<synchronous>, transform_indices = @transform_2, window_bounds = array<i64: 1, 128>}, {pipeline_mode = #tpu.pipeline_mode<synchronous>, transform_indices = @transform_3, window_bounds = array<i64: 128, 128>}, {pipeline_mode = #tpu.pipeline_mode<synchronous>, transform_indices = @transform_4, window_bounds = array<i64: 1, 128>}, {transform_indices = @transform_5, window_bounds = array<i64: 32, 128>}]} {
    %c0 = arith.constant 0 : index
    %c0_0 = arith.constant 0 : index
    %0 = vector.load %arg1[%c0, %c0_0] : memref<32x3xbf16, #tpu.memory_space<vmem>>, vector<32x3xbf16>
    %c0_1 = arith.constant 0 : index
    %c0_2 = arith.constant 0 : index
    %1 = vector.load %arg2[%c0_1, %c0_2] : memref<3x128xbf16, #tpu.memory_space<vmem>>, vector<3x128xbf16>
    %cst = arith.constant dense<0.000000e+00> : vector<32x128xf32>
    %2 = tpu.matmul %0, %1, %cst {dimension_numbers = #tpu.dot_dimension_numbers<[1], [0], [0], [1], [0, 0, 1, 1], [], []>} : vector<32x3xbf16>, vector<3x128xbf16>, vector<32x128xf32> -> vector<32x128xf32>
    %c0_3 = arith.constant 0 : index
    %c0_4 = arith.constant 0 : index
    %3 = vector.load %arg3[%c0_3, %c0_4] : memref<1x128xf32, #tpu.memory_space<vmem>>, vector<1x128xf32>
    %4 = vector.broadcast %3 : vector<1x128xf32> to vector<32x128xf32>
    %5 = arith.addf %2, %4 : vector<32x128xf32>
    %6 = math.exp %5 : vector<32x128xf32>
    %7 = arith.truncf %6 : vector<32x128xf32> to vector<32x128xbf16>
    %c0_5 = arith.constant 0 : index
    %c0_6 = arith.constant 0 : index
    %8 = vector.load %arg4[%c0_5, %c0_6] : memref<128x128xbf16, #tpu.memory_space<vmem>>, vector<128x128xbf16>
    %cst_7 = arith.constant dense<0.000000e+00> : vector<32x128xf32>
    %9 = tpu.matmul %7, %8, %cst_7 {dimension_numbers = #tpu.dot_dimension_numbers<[1], [0], [0], [1], [0, 0, 1, 1], [], []>} : vector<32x128xbf16>, vector<128x128xbf16>, vector<32x128xf32> -> vector<32x128xf32>
    %c0_8 = arith.constant 0 : index
    %c0_9 = arith.constant 0 : index
    %10 = vector.load %arg5[%c0_8, %c0_9] : memref<1x128xf32, #tpu.memory_space<vmem>>, vector<1x128xf32>
    %11 = vector.broadcast %10 : vector<1x128xf32> to vector<32x128xf32>
    %12 = arith.addf %9, %11 : vector<32x128xf32>
    %c0_10 = arith.constant 0 : index
    %c0_11 = arith.constant 0 : index
    %13 = vector.load %arg6[%c0_10, %c0_11] : memref<32x128xf32, #tpu.memory_space<vmem>>, vector<32x128xf32>
    tpu.vector_store %arg6[%c0_10, %c0_11], %12 {strides = array<i32>} : memref<32x128xf32, #tpu.memory_space<vmem>>, vector<32x128xf32>,
    return
  }
  func.func @transform_0(%arg0: i32) -> (i32, i32) {
    %c0_i32 = arith.constant 0 : i32
    %c0_i32_0 = arith.constant 0 : i32
    return %arg0, %c0_i32 : i32, i32
  }
  func.func @transform_1(%arg0: i32) -> (i32, i32) {
    %c0_i32 = arith.constant 0 : i32
    %c0_i32_0 = arith.constant 0 : i32
    %c0_i32_1 = arith.constant 0 : i32
    return %c0_i32, %c0_i32_0 : i32, i32
  }
  func.func @transform_2(%arg0: i32) -> (i32, i32) {
    %c0_i32 = arith.constant 0 : i32
    %c0_i32_0 = arith.constant 0 : i32
    %c0_i32_1 = arith.constant 0 : i32
    return %c0_i32, %c0_i32_0 : i32, i32
  }
  func.func @transform_3(%arg0: i32) -> (i32, i32) {
    %c0_i32 = arith.constant 0 : i32
    %c0_i32_0 = arith.constant 0 : i32
    %c0_i32_1 = arith.constant 0 : i32
    return %c0_i32, %c0_i32_0 : i32, i32
  }
  func.func @transform_4(%arg0: i32) -> (i32, i32) {
    %c0_i32 = arith.constant 0 : i32
    %c0_i32_0 = arith.constant 0 : i32
    %c0_i32_1 = arith.constant 0 : i32
    return %c0_i32, %c0_i32_0 : i32, i32
  }
  func.func @transform_5(%arg0: i32) -> (i32, i32) {
    %c0_i32 = arith.constant 0 : i32
    %c0_i32_0 = arith.constant 0 : i32
    return %arg0, %c0_i32 : i32, i32
  }
}

</mosaic_0001>

<llo_original>
// kernel: tpu_custom_call.1
$region0: #{tpu_custom_call.1}
  #allocation0 [shape = 'u32[]', space=smem, size = 0x4, offset = 0x4, fixed_abs, tag = 'smem constant byte address 0x4 - core index']
  #allocation1 [shape = 'u32[144,128]{1,0:T(1,128)}', space=vmem, size = 0x12000, scoped, tag = 'internal scratch']
  %s0 = inlined_call_operand.vmem [shape: bf16[64,3], index: 0, kind: input, shape index: {}]
  %s1 = inlined_call_operand.vmem [shape: bf16[3,128], index: 1, kind: input, shape index: {}]
  %s2 = inlined_call_operand.vmem [shape: f32[1,128], index: 2, kind: input, shape index: {}]
  %s3 = inlined_call_operand.hbm [shape: bf16[128,128], index: 3, kind: input, shape index: {}]
  %s4 = inlined_call_operand.vmem [shape: f32[1,128], index: 4, kind: input, shape index: {}]
  %s5 = inlined_call_operand.hbm [shape: f32[64,128], index: 5, kind: output, shape index: {}]
  %s6 = sld [smem:[#allocation0]]
  $region57: #{tpu_custom_call.1} parent=0
    _
  %s8 = ssub.s32 1, %s6
  %s9 = scalar_select 0, %s8, %s6
  $region1: #{tpu_custom_call.1} parent=0
    #allocation2 [shape = 'u8[32768]{0}', space=vmem, size = 0x8000, scoped, tag = 'input window, operand 3, single buffered']
    #allocation3 [shape = 's32[2]{0}', space=sflag, size = 0x8, scoped, tag = 'scoped memory for tpu_custom_call.1']
    #allocation4 [shape = 's32[2]{0}', space=sflag, size = 0x8, scoped, tag = 'scoped memory for tpu_custom_call.1']
    #allocation5 [shape = 'u8[32768]{0}', space=vmem, size = 0x8000, scoped, tag = 'output window, operand 0']
    %10 = vsyncpa [#allocation3], 0
    %11 = vsyncpa [#allocation4], 0
    %s12 = scalar_lea.sflag [#allocation4], 1
    %13 = vsyncpa %s12, 0
    loop: start=0, step=1, limit=4
    $region2: #{tpu_custom_call.1} parent=1 // loop_pre_header
      _
    $region3: #{tpu_custom_call.1} parent=1 // loop_header
      %s15 = sphi 0, %s19
      %p16 = scmp.ge.s32.totalorder %s15, 4
      %s25 = sphi 0, %s27
      %s28 = sphi 0, %s25
      %s29 = sphi 0, %s28
      %s45 = sphi 0, %s29
      %s49 = sphi 0, %s49
      %s51 = sphi 0, %s49
      %s52 = sphi 0, %s51
      %s66 = sphi 0, %s52
      %s70 = sphi 0, %s70
      %s72 = sphi 0, %s70
      %s73 = sphi 0, %s72
      %s87 = sphi 0, %s73
      %s91 = sphi 0, %s91
      %s93 = sphi 0, %s91
      %s94 = sphi 0, %s93
      %s108 = sphi 0, %s94
      %s112 = sphi 0, %s112
      %s114 = sphi 0, %s112
      %s115 = sphi 0, %s114
      %s129 = sphi 0, %s115
      %s135 = sphi 0, %s137
      %s138 = sphi 0, %s135
      %s139 = sphi 0, %s138
      %s155 = sphi 0, %s139
    $region4: #{tpu_custom_call.1} parent=1 // loop_header_branch
      %18 = sbr.rel (%p16) target = $region8
    $region5: #{tpu_custom_call.1} parent=1 // loop_body
      %s20 = ssub.s32 %s15, 1
      %s21 = ssub.s32 %s15, 2
      %s22 = sadd.s32 %s15, 1
      %s23 = ssub.s32 %s15, %s22
      %p24 = scmp.eq.s32.totalorder %s23, 0
      %s26 = sadd.s32 %s25, 1
      %s27 = scalar_select %p24, %s25, %s26
      %p30 = pneg %p24
      %p31 = scmp.eq.s32.totalorder %s15, 1
      %p32 = por %p30, %p31
      %p33 = scmp.ne.s32.totalorder %s25, %s28
      %p34 = scmp.eq.s32.totalorder %s15, 0
      %p35 = por %p33, %p34
      %p36 = scmp.ne.s32.totalorder %s25, %s28
      %p37 = scmp.eq.s32.totalorder %s20, 1
      %p38 = por %p36, %p37
      %p39 = scmp.ne.s32.totalorder %s28, %s29
      %p40 = scmp.eq.s32.totalorder %s20, 0
      %p41 = por %p39, %p40
      %p42 = scmp.ne.s32.totalorder %s28, %s29
      %p43 = scmp.eq.s32.totalorder %s21, 1
      %p44 = por %p42, %p43
      %p46 = scmp.ne.s32.totalorder %s29, %s45
      %p47 = scmp.eq.s32.totalorder %s21, 0
      %p48 = por %p46, %p47
      %s50 = sadd.s32 %s49, 1
      %p53 = scmp.eq.s32.totalorder %s15, 1
      %p54 = scmp.ne.s32.totalorder %s49, %s51
      %p55 = scmp.eq.s32.totalorder %s15, 0
      %p56 = por %p54, %p55
      %p57 = scmp.ne.s32.totalorder %s49, %s51
      %p58 = scmp.eq.s32.totalorder %s20, 1
      %p59 = por %p57, %p58
      %p60 = scmp.ne.s32.totalorder %s51, %s52
      %p61 = scmp.eq.s32.totalorder %s20, 0
      %p62 = por %p60, %p61
      %p63 = scmp.ne.s32.totalorder %s51, %s52
      %p64 = scmp.eq.s32.totalorder %s21, 1
      %p65 = por %p63, %p64
      %p67 = scmp.ne.s32.totalorder %s52, %s66
      %p68 = scmp.eq.s32.totalorder %s21, 0
      %p69 = por %p67, %p68
      %s71 = sadd.s32 %s70, 1
      %p74 = scmp.eq.s32.totalorder %s15, 1
      %p75 = scmp.ne.s32.totalorder %s70, %s72
      %p76 = scmp.eq.s32.totalorder %s15, 0
      %p77 = por %p75, %p76
      %p78 = scmp.ne.s32.totalorder %s70, %s72
      %p79 = scmp.eq.s32.totalorder %s20, 1
      %p80 = por %p78, %p79
      %p81 = scmp.ne.s32.totalorder %s72, %s73
      %p82 = scmp.eq.s32.totalorder %s20, 0
      %p83 = por %p81, %p82
      %p84 = scmp.ne.s32.totalorder %s72, %s73
      %p85 = scmp.eq.s32.totalorder %s21, 1
      %p86 = por %p84, %p85
      %p88 = scmp.ne.s32.totalorder %s73, %s87
      %p89 = scmp.eq.s32.totalorder %s21, 0
      %p90 = por %p88, %p89
      %s92 = sadd.s32 %s91, 1
      %p95 = scmp.eq.s32.totalorder %s15, 1
      %p96 = scmp.ne.s32.totalorder %s91, %s93
      %p97 = scmp.eq.s32.totalorder %s15, 0
      %p98 = por %p96, %p97
      %p99 = scmp.ne.s32.totalorder %s91, %s93
      %p100 = scmp.eq.s32.totalorder %s20, 1
      %p101 = por %p99, %p100
      %p102 = scmp.ne.s32.totalorder %s93, %s94
      %p103 = scmp.eq.s32.totalorder %s20, 0
      %p104 = por %p102, %p103
      %p105 = scmp.ne.s32.totalorder %s93, %s94
      %p106 = scmp.eq.s32.totalorder %s21, 1
      %p107 = por %p105, %p106
      %p109 = scmp.ne.s32.totalorder %s94, %s108
      %p110 = scmp.eq.s32.totalorder %s21, 0
      %p111 = por %p109, %p110
      %s113 = sadd.s32 %s112, 1
      %p116 = scmp.eq.s32.totalorder %s15, 1
      %p117 = scmp.ne.s32.totalorder %s112, %s114
      %p118 = scmp.eq.s32.totalorder %s15, 0
      %p119 = por %p117, %p118
      %p120 = scmp.ne.s32.totalorder %s112, %s114
      %p121 = scmp.eq.s32.totalorder %s20, 1
      %p122 = por %p120, %p121
      %p123 = scmp.ne.s32.totalorder %s114, %s115
      %p124 = scmp.eq.s32.totalorder %s20, 0
      %p125 = por %p123, %p124
      %p126 = scmp.ne.s32.totalorder %s114, %s115
      %p127 = scmp.eq.s32.totalorder %s21, 1
      %p128 = por %p126, %p127
      %p130 = scmp.ne.s32.totalorder %s115, %s129
      %p131 = scmp.eq.s32.totalorder %s21, 0
      %p132 = por %p130, %p131
      %s133 = ssub.s32 %s15, %s22
      %p134 = scmp.eq.s32.totalorder %s133, 0
      %s136 = sadd.s32 %s135, 1
      %s137 = scalar_select %p134, %s135, %s136
      %p140 = pneg %p134
      %p141 = scmp.eq.s32.totalorder %s15, 1
      %p142 = por %p140, %p141
      %p143 = scmp.ne.s32.totalorder %s135, %s138
      %p144 = scmp.eq.s32.totalorder %s15, 0
      %p145 = por %p143, %p144
      %p146 = scmp.ne.s32.totalorder %s135, %s138
      %p147 = scmp.eq.s32.totalorder %s20, 1
      %p148 = por %p146, %p147
      %p149 = scmp.ne.s32.totalorder %s138, %s139
      %p150 = scmp.eq.s32.totalorder %s20, 0
      %p151 = por %p149, %p150
      %p152 = scmp.ne.s32.totalorder %s138, %s139
      %p153 = scmp.eq.s32.totalorder %s21, 1
      %p154 = por %p152, %p153
      %p156 = scmp.ne.s32.totalorder %s139, %s155
      %p157 = scmp.eq.s32.totalorder %s21, 0
      %p158 = por %p156, %p157
      %p159 = scmp.le.s32.totalorder 1, %s15
      %p160 = scmp.lt.s32.totalorder %s15, 3
      %p161 = pnand %p159, %p160
      %p162 = pneg %p161
      // Predicated region
      $region9: #{tpu_custom_call.1} parent=5 // pred_check
        _
      $region10: #{tpu_custom_call.1} parent=5 // pred_check_branch
        %164 = sbr.rel (%p161) target = $region12
      $region11: #{tpu_custom_call.1} parent=5 // pred_region
        %s165 = ssub.s32 %s15, 1
        // Predicated region
        $region13: #{tpu_custom_call.1} parent=11 // pred_check
          %p166 = pneg %p62
        $region14: #{tpu_custom_call.1} parent=11 // pred_check_branch
          %168 = sbr.rel (%p166) target = $region16
        $region15: #{tpu_custom_call.1} parent=11 // pred_region
          _
        $region16: #{tpu_custom_call.1} parent=11 // pred_fallthru
          _
        // Predicated region
        $region17: #{tpu_custom_call.1} parent=11 // pred_check
          %p169 = pneg %p83
        $region18: #{tpu_custom_call.1} parent=11 // pred_check_branch
          %171 = sbr.rel (%p169) target = $region20
        $region19: #{tpu_custom_call.1} parent=11 // pred_region
          _
        $region20: #{tpu_custom_call.1} parent=11 // pred_fallthru
          _
        // Predicated region
        $region21: #{tpu_custom_call.1} parent=11 // pred_check
          %p172 = pneg %p104
        $region22: #{tpu_custom_call.1} parent=11 // pred_check_branch
          %174 = sbr.rel (%p172) target = $region24
        $region23: #{tpu_custom_call.1} parent=11 // pred_region
          %s176 = ssub.s32 1024, 1024
          %177 = vsyncadd [#allocation3], %s176
          %s178 = sshll.u32 [#allocation2], 4
          %s179 = int_to_ptr.vmem [resolvable:$true] %s178
          %184 = dma.hbm_to_vmem [thread:$0]  %s3, 1024, %s179, [#allocation3], 64, 64, 4
        $region24: #{tpu_custom_call.1} parent=11 // pred_fallthru
          _
        // Predicated region
        $region25: #{tpu_custom_call.1} parent=11 // pred_check
          %p185 = pneg %p125
        $region26: #{tpu_custom_call.1} parent=11 // pred_check_branch
          %187 = sbr.rel (%p185) target = $region28
        $region27: #{tpu_custom_call.1} parent=11 // pred_region
          _
        $region28: #{tpu_custom_call.1} parent=11 // pred_fallthru
          _
      $region12: #{tpu_custom_call.1} parent=5 // pred_fallthru
        _
      %p188 = scmp.lt.s32.totalorder %s15, 2
      // Predicated region
      $region29: #{tpu_custom_call.1} parent=5 // pred_check
        %p189 = pneg %p188
      $region30: #{tpu_custom_call.1} parent=5 // pred_check_branch
        %191 = sbr.rel (%p189) target = $region32
      $region31: #{tpu_custom_call.1} parent=5 // pred_region
        // Predicated region
        $region33: #{tpu_custom_call.1} parent=31 // pred_check
          %p192 = pneg %p35
        $region34: #{tpu_custom_call.1} parent=31 // pred_check_branch
          %194 = sbr.rel (%p192) target = $region36
        $region35: #{tpu_custom_call.1} parent=31 // pred_region
          %s195 = smul.u32 4, %s15
          %p196 = scmp.lt.s32.totalorder %s195, 7
          %s197 = scalar_select %p196, %s195, 7
          %s198 = smul.addr %s197, 4
          %s199 = scalar_lea.vmem %s0, %s198
          %s200 = smul.u32 4, %s15
        $region36: #{tpu_custom_call.1} parent=31 // pred_fallthru
          _
      $region32: #{tpu_custom_call.1} parent=5 // pred_fallthru
        _
      %p201 = scmp.le.s32.totalorder 1, %s15
      %p202 = scmp.lt.s32.totalorder %s15, 3
      %p203 = pnand %p201, %p202
      %p204 = pneg %p203
      // Predicated region
      $region37: #{tpu_custom_call.1} parent=5 // pred_check
        _
      $region38: #{tpu_custom_call.1} parent=5 // pred_check_branch
        %206 = sbr.rel (%p203) target = $region40
      $region39: #{tpu_custom_call.1} parent=5 // pred_region
        %s207 = ssub.s32 %s15, 1
        // Predicated region
        $region41: #{tpu_custom_call.1} parent=39 // pred_check
          %p208 = pneg %p104
        $region42: #{tpu_custom_call.1} parent=39 // pred_check_branch
          %210 = sbr.rel (%p208) target = $region44
        $region43: #{tpu_custom_call.1} parent=39 // pred_region
          %211 = dma.done [#allocation3], 1024
        $region44: #{tpu_custom_call.1} parent=39 // pred_fallthru
          _
        %s212 = smul.u32 4, %s20
        %p213 = scmp.lt.s32.totalorder %s212, 7
        %s214 = scalar_select %p213, %s212, 7
        %s215 = smul.addr %s214, 4
        %s216 = scalar_lea.vmem %s0, %s215
        %p217 = pneg %p41
        %p218 = pneg %p38
        %p219 = pneg %p62
        %p220 = pneg %p59
        %p221 = pneg %p83
        %p222 = pneg %p80
        %p223 = pneg %p104
        %p224 = pneg %p101
        %p225 = pneg %p125
        %p226 = pneg %p122
        %p227 = pneg %p151
        %p228 = pneg %p148
        %s229 = sand.u32 %s138, 1
        %s230 = scalar_lea.sflag [#allocation4], %s229
        %s231 = sand.u32 %s138, 1
        %s232 = smul.addr %s231, 32
        %s233 = scalar_lea.vmem [#allocation5], %s232
        %s234 = smul.u32 4, %s20
        %p235 = scmp.lt.s32.totalorder %s234, 7
        %s236 = scalar_select %p235, %s234, 7
        %s237 = smul.addr %s236, 4
        %s238 = scalar_lea.vmem %s0, %s237
        %s239 = smul.u32 4, %s20
        %s240 = smul.u32 4, %s20
        %v242 = vld [vmem:[%s238] sm:$0xf]
        %v243 = vld [vmem:[%s238 + $0x4] sm:$0xf]
        %v244 = vld [vmem:[%s238 + $0x8] sm:$0xf]
        %v245 = vld [vmem:[%s238 + $0xc] sm:$0xf]
        %v246 = vld [vmem:[%s1] sm:$0x3]
        %v247 = vld [vmem:[%s2] sm:$0x1]
        %v249 = vlaneseq
        %v250 = vshrl.u32 %v249, 7
        %v251 = vsub.s32 0, %v250
        %v252 = vrot.slane %v247, %v251
        %v258 = vunpack.c.l.b16 %v242
        %v259 = vunpack.c.l.b16 %v243
        %v260 = vunpack.c.l.b16 %v244
        %v261 = vunpack.c.l.b16 %v245
        %v262 = vpack.c.b16 %v259, %v258
        %v263 = vpack.c.b16 %v261, %v260
        %vm264 = vcmask 23552
        %v266 = vsel %vm264, %v262, 0
        %v269 = vsel %vm264, %v263, 0
        %vm271 = vcmask 1040384
        %vm272 = vcmask 1041408
        %v273 = vsel %vm271, 4294967295, 65535
        %v274 = vsel %vm272, %v273, 0
        %v276 = vand.u32 %v246, %v274
        %278 = vmatprep.subr.bf16.mxu0 0
        %279 = vmatpush1.bf16.msra.mxu0 0
        %280 = vmatprep.subr.bf16.mxu0 0
        %281 = vmatpush1.bf16.msra.mxu0 0
        %282 = vmatprep.subr.bf16.mxu0 0
        %283 = vmatpush1.bf16.msra.mxu0 0
        %284 = vmatprep.subr.bf16.mxu0 0
        %285 = vmatpush1.bf16.msra.mxu0 0
        %286 = vmatprep.subr.bf16.mxu0 0
        %287 = vmatpush1.bf16.msra.mxu0 0
        %288 = vmatprep.subr.bf16.mxu0 0
        %289 = vmatpush1.bf16.msra.mxu0 0
        %290 = vmatprep.subr.bf16.mxu0 0
        %291 = vmatpush1.bf16.msra.mxu0 0
        %292 = vmatprep.subr.bf16.mxu0 0
        %293 = vmatpush1.bf16.msra.mxu0 %v276
        %294 = vmatprep.subr.bf16.mxu0 0
        %295 = vmatpush2.bf16.msra.mxu0 0
        %296 = vmatprep.subr.bf16.mxu0 0
        %297 = vmatpush2.bf16.msra.mxu0 0
        %298 = vmatprep.subr.bf16.mxu0 0
        %299 = vmatpush2.bf16.msra.mxu0 0
        %300 = vmatprep.subr.bf16.mxu0 0
        %301 = vmatpush2.bf16.msra.mxu0 0
        %302 = vmatprep.subr.bf16.mxu0 0
        %303 = vmatpush2.bf16.msra.mxu0 0
        %304 = vmatprep.subr.bf16.mxu0 0
        %305 = vmatpush2.bf16.msra.mxu0 0
        %306 = vmatprep.subr.bf16.mxu0 0
        %307 = vmatpush2.bf16.msra.mxu0 0
        %308 = vmatprep.subr.bf16.mxu0 0
        %309 = vmatpush2.bf16.msra.mxu0 0
        %310 = vmatprep.mubr.bf16.mxu0 0
        %311 = vmatmul.mubr.bf16.gmra.mxu0 %v266
        %v312 = vpop.f32.mrf.mxu0
        %v313 = vadd.f32 %v252, %v312
        %v314 = vpop.f32.mrf.mxu0
        %v315 = vpop.f32.mrf.mxu0
        %v316 = vadd.f32 %v252, %v315
        %v317 = vpop.f32.mrf.mxu0
        %318 = vmatprep.mubr.bf16.mxu0 0
        %319 = vmatmul.mubr.bf16.gmra.mxu0 %v269
        %v320 = vpop.f32.mrf.mxu0
        %v321 = vadd.f32 %v252, %v320
        %v322 = vpop.f32.mrf.mxu0
        %v323 = vpop.f32.mrf.mxu0
        %v324 = vadd.f32 %v252, %v323
        %v325 = vpop.f32.mrf.mxu0
        %326 = vdwg.mxu0
        %v327 = vmul.f32 %v313, 1.442695
        %v328 = vpow.pop %v327
        %v329 = vmul.f32 %v316, 1.442695
        %v330 = vpow.pop %v329
        %v331 = vmul.f32 %v321, 1.442695
        %v332 = vpow.pop %v331
        %v333 = vmul.f32 %v324, 1.442695
        %v334 = vpow.pop %v333
        %v335 = vpack.c.bf16 %v330, %v328
        %v336 = vpack.c.bf16 %v334, %v332
        %v337 = vld [vmem:[#allocation2] sm:$0xf]
        %v338 = vld [vmem:[#allocation2 + $0x4] sm:$0xf]
        %v339 = vld [vmem:[#allocation2 + $0x8] sm:$0xf]
        %v340 = vld [vmem:[#allocation2 + $0xc] sm:$0xf]
        %v341 = vld [vmem:[#allocation2 + $0x10] sm:$0xf]
        %v342 = vld [vmem:[#allocation2 + $0x14] sm:$0xf]
        %v343 = vld [vmem:[#allocation2 + $0x18] sm:$0xf]
        %v344 = vld [vmem:[#allocation2 + $0x1c] sm:$0xf]
        %v345 = vld [vmem:[#allocation2 + $0x20] sm:$0xf]
        %v346 = vld [vmem:[#allocation2 + $0x24] sm:$0xf]
        %v347 = vld [vmem:[#allocation2 + $0x28] sm:$0xf]
        %v348 = vld [vmem:[#allocation2 + $0x2c] sm:$0xf]
        %v349 = vld [vmem:[#allocation2 + $0x30] sm:$0xf]
        %v350 = vld [vmem:[#allocation2 + $0x34] sm:$0xf]
        %v351 = vld [vmem:[#allocation2 + $0x38] sm:$0xf]
        %v352 = vld [vmem:[#allocation2 + $0x3c] sm:$0xf]
        %v353 = vld [vmem:[%s4] sm:$0x1]
        %v355 = vlaneseq
        %v356 = vshrl.u32 %v355, 7
        %v357 = vsub.s32 0, %v356
        %v358 = vrot.slane %v353, %v357
        %v376 = vunpack.c.l.b16 %v337
        %v377 = vunpack.c.l.b16 %v338
        %v378 = vunpack.c.l.b16 %v339
        %v379 = vunpack.c.l.b16 %v340
        %v380 = vunpack.c.l.b16 %v341
        %v381 = vunpack.c.l.b16 %v342
        %v382 = vunpack.c.l.b16 %v343
        %v383 = vunpack.c.l.b16 %v344
        %v384 = vunpack.c.l.b16 %v345
        %v385 = vunpack.c.l.b16 %v346
        %v386 = vunpack.c.l.b16 %v347
        %v387 = vunpack.c.l.b16 %v348
        %v388 = vunpack.c.l.b16 %v349
        %v389 = vunpack.c.l.b16 %v350
        %v390 = vunpack.c.l.b16 %v351
        %v391 = vunpack.c.l.b16 %v352
        %v392 = vpack.c.b16 %v377, %v376
        %v393 = vpack.c.b16 %v379, %v378
        %v394 = vpack.c.b16 %v381, %v380
        %v395 = vpack.c.b16 %v383, %v382
        %v396 = vpack.c.b16 %v385, %v384
        %v397 = vpack.c.b16 %v387, %v386
        %v398 = vpack.c.b16 %v389, %v388
        %v399 = vpack.c.b16 %v391, %v390
        %408 = vmatprep.subr.bf16.mxu0 0
        %409 = vmatpush1.bf16.msra.mxu0 %v399
        %410 = vmatprep.subr.bf16.mxu0 0
        %411 = vmatpush1.bf16.msra.mxu0 %v398
        %412 = vmatprep.subr.bf16.mxu0 0
        %413 = vmatpush1.bf16.msra.mxu0 %v397
        %414 = vmatprep.subr.bf16.mxu0 0
        %415 = vmatpush1.bf16.msra.mxu0 %v396
        %416 = vmatprep.subr.bf16.mxu0 0
        %417 = vmatpush1.bf16.msra.mxu0 %v395
        %418 = vmatprep.subr.bf16.mxu0 0
        %419 = vmatpush1.bf16.msra.mxu0 %v394
        %420 = vmatprep.subr.bf16.mxu0 0
        %421 = vmatpush1.bf16.msra.mxu0 %v393
        %422 = vmatprep.subr.bf16.mxu0 0
        %423 = vmatpush1.bf16.msra.mxu0 %v392
        %424 = vmatprep.subr.bf16.mxu0 0
        %425 = vmatpush2.bf16.msra.mxu0 0
        %426 = vmatprep.subr.bf16.mxu0 0
        %427 = vmatpush2.bf16.msra.mxu0 0
        %428 = vmatprep.subr.bf16.mxu0 0
        %429 = vmatpush2.bf16.msra.mxu0 0
        %430 = vmatprep.subr.bf16.mxu0 0
        %431 = vmatpush2.bf16.msra.mxu0 0
        %432 = vmatprep.subr.bf16.mxu0 0
        %433 = vmatpush2.bf16.msra.mxu0 0
        %434 = vmatprep.subr.bf16.mxu0 0
        %435 = vmatpush2.bf16.msra.mxu0 0
        %436 = vmatprep.subr.bf16.mxu0 0
        %437 = vmatpush2.bf16.msra.mxu0 0
        %438 = vmatprep.subr.bf16.mxu0 0
        %439 = vmatpush2.bf16.msra.mxu0 0
        %440 = vmatprep.mubr.bf16.mxu0 0
        %441 = vmatmul.mubr.bf16.gmra.mxu0 %v335
        %v442 = vpop.f32.mrf.mxu0
        %v443 = vadd.f32 %v358, %v442
        %v444 = vpop.f32.mrf.mxu0
        %v445 = vpop.f32.mrf.mxu0
        %v446 = vadd.f32 %v358, %v445
        %v447 = vpop.f32.mrf.mxu0
        %448 = vmatprep.mubr.bf16.mxu0 0
        %449 = vmatmul.mubr.bf16.gmra.mxu0 %v336
        %v450 = vpop.f32.mrf.mxu0
        %v451 = vadd.f32 %v358, %v450
        %v452 = vpop.f32.mrf.mxu0
        %v453 = vpop.f32.mrf.mxu0
        %v454 = vadd.f32 %v358, %v453
        %v455 = vpop.f32.mrf.mxu0
        %456 = vdwg.mxu0
        %457 = vst [vmem:[%s233] sm:$0xff] %v443
        %458 = vst [vmem:[%s233 + $0x8] sm:$0xff] %v446
        %459 = vst [vmem:[%s233 + $0x10] sm:$0xff] %v451
        %460 = vst [vmem:[%s233 + $0x18] sm:$0xff] %v454
        %s461 = sand.u32 %s138, 1
        %s462 = scalar_lea.sflag [#allocation4], %s461
        %s463 = sand.u32 %s138, 1
        %s464 = smul.addr %s463, 32
        %s465 = scalar_lea.vmem [#allocation5], %s464
        // Predicated region
        $region45: #{tpu_custom_call.1} parent=39 // pred_check
          %p466 = pneg %p148
        $region46: #{tpu_custom_call.1} parent=39 // pred_check_branch
          %468 = sbr.rel (%p466) target = $region48
        $region47: #{tpu_custom_call.1} parent=39 // pred_region
          %s469 = smul.u32 4, %s20
          %s471 = ssub.s32 512, 512
          %472 = vsyncadd %s462, %s471
          %s473 = smul.addr %s469, 128
          %s474 = scalar_lea.hbm %s5, %s473
          %s475 = sshll.u32 %s465, 4
          %s476 = int_to_ptr.vmem [resolvable:$true] %s475
          %481 = dma.vmem_to_hbm [thread:$0]  %s476, 512, %s474, %s462, 128, 128, 8
        $region48: #{tpu_custom_call.1} parent=39 // pred_fallthru
          _
      $region40: #{tpu_custom_call.1} parent=5 // pred_fallthru
        _
      %p482 = scmp.le.s32.totalorder 2, %s15
      // Predicated region
      $region49: #{tpu_custom_call.1} parent=5 // pred_check
        %p483 = pneg %p482
      $region50: #{tpu_custom_call.1} parent=5 // pred_check_branch
        %485 = sbr.rel (%p483) target = $region52
      $region51: #{tpu_custom_call.1} parent=5 // pred_region
        %s486 = ssub.s32 %s15, 2
        // Predicated region
        $region53: #{tpu_custom_call.1} parent=51 // pred_check
          %p487 = pneg %p154
        $region54: #{tpu_custom_call.1} parent=51 // pred_check_branch
          %489 = sbr.rel (%p487) target = $region56
        $region55: #{tpu_custom_call.1} parent=51 // pred_region
          %s490 = sand.u32 %s139, 1
          %s491 = scalar_lea.sflag [#allocation4], %s490
          %s492 = sand.u32 %s139, 1
          %s493 = smul.addr %s492, 32
          %s494 = scalar_lea.vmem [#allocation5], %s493
          %495 = dma.done %s491, 512
        $region56: #{tpu_custom_call.1} parent=51 // pred_fallthru
          _
      $region52: #{tpu_custom_call.1} parent=5 // pred_fallthru
        _
    $region6: #{tpu_custom_call.1} parent=1 // loop_footer
      %s19 = sadd.s32 1, %s15
    $region7: #{tpu_custom_call.1} parent=1 // loop_footer_branch
      %14 = sbr.rel target = $region3
    $region8: #{tpu_custom_call.1} parent=1 // loop_exit
      _
    %496 = vsyncpa [#allocation3], 1
    %s497 = scalar_lea.sflag [#allocation3], 1
    %498 = vsyncpa %s497, 1
    %499 = vsyncpa [#allocation4], 1
    %s500 = scalar_lea.sflag [#allocation4], 1
    %501 = vsyncpa %s500, 1

</llo_original>
